<compile_context>
chip_gen: v7x
topology: tpu7x:2x2x1
jax: 0.10.0
libtpu: 0.0.40
codegen_flags: <defaults>
</compile_context>

<pallas_src>
import jax
import jax.numpy as jnp
from jax.experimental import pallas as pl
from jax.experimental.pallas import tpu as pltpu


def mrf_fc_kernel(xout_ref, c_ref, w1_ref, b1_ref, w2_ref, b2_ref, w3_ref,
                  o_ref):
    """One lane-dense tile of the fc MLP plus the precomputed fx term.

    xout_ref: (1, TILE) f32   fx(X) values for this tile's flat samples
    c_ref   : (L, TILE)       covariates, samples on lanes (col j = t*N + n)
    w1_ref  : (H, L)   b1_ref: (H, 1) f32
    w2_ref  : (H, H)   b2_ref: (H, 1) f32
    w3_ref  : (H, 1) f32
    o_ref   : (1, TILE) f32
    """
    # Layer 1: (H,L)@(L,TILE) on the MXU, f32 accumulation, tanh on the EUP.
    h1 = jnp.tanh(
        jnp.dot(w1_ref[...], c_ref[...], preferred_element_type=jnp.float32)
        + b1_ref[...])                                            # (H, TILE)
    # Layer 2: (H,H)@(H,TILE).
    h2 = jnp.tanh(
        jnp.dot(w2_ref[...], h1.astype(w2_ref.dtype),
                preferred_element_type=jnp.float32)
        + b2_ref[...])                                            # (H, TILE)
    # Layer 3 (H -> 1, no bias): keep it off the MXU.  An M=1 matmul uses
    # 1/128 of the MXU result rows and drains through the sequential MRF on
    # v5e/v6e; VPU multiply + XLU sublane reduce uses otherwise idle slots.
    cout = jnp.sum(w3_ref[...] * h2, axis=0, keepdims=True)       # (1, TILE)
    # Single unmasked lane-dense store.
    o_ref[...] = xout_ref[...] + cout


def model_forward(X, C, params, *, tile=512, compute_dtype=jnp.float32):
    """X: (T, P) f32, C: (T, N, L) f32 (PyTorch convention). Returns (T, N)."""
    T, P = X.shape
    _, N, L = C.shape
    H = params["w1"].shape[0]
    TN = T * N

    X = X.astype(jnp.float32)
    C = C.astype(jnp.float32)

    # fx path: tiny (T,P)@(P,N) matmul computed here once; only TN floats of
    # fx data reach the kernel (vs (2P+1)*TN replicated floats before).
    xout = (X @ params["wx"].T + params["bx"]).reshape(1, TN)      # (1, TN)

    # Lane-dense covariate slab: column j = t*N + n holds C[t, n, :].  Runs
    # under the same jit as the kernel so XLA can fuse it with C's producer
    # and the padding below.
    # TODO(synk): for very large T, grid over T and transpose small (Tb*N, L)
    # slabs in-kernel instead, dropping this extra HBM round-trip of C.
    c_slab = jnp.transpose(C, (2, 0, 1)).reshape(L, TN)            # (L, TN)

    # Tile the flat T*N axis; tile must be a multiple of 128 so every output
    # store is a full-lane unmasked vst.
    tile = max(128, (int(tile) // 128) * 128)
    tile = min(tile, pl.cdiv(TN, 128) * 128)
    tn_pad = pl.cdiv(TN, tile) * tile
    if tn_pad != TN:
        c_slab = jnp.pad(c_slab, ((0, 0), (0, tn_pad - TN)))
        xout = jnp.pad(xout, ((0, 0), (0, tn_pad - TN)))

    # Dtypes: MXU operands (C, w1, w2) in compute_dtype (bf16 worthwhile on
    # v6e/v7x; keep f32 on v5e); biases / w3 / fx term stay f32.
    c_slab = c_slab.astype(compute_dtype)
    w1 = params["w1"].astype(compute_dtype)
    w2 = params["w2"].astype(compute_dtype)
    b1 = params["b1"].reshape(H, 1).astype(jnp.float32)
    b2 = params["b2"].reshape(H, 1).astype(jnp.float32)
    w3 = params["w3"].reshape(H, 1).astype(jnp.float32)

    grid = (tn_pad // tile,)

    pred_flat = pl.pallas_call(
        mrf_fc_kernel,
        out_shape=jax.ShapeDtypeStruct((1, tn_pad), jnp.float32),
        grid_spec=pltpu.PrefetchScalarGridSpec(
            num_scalar_prefetch=0,
            grid=grid,
            in_specs=[
                pl.BlockSpec((1, tile), lambda i: (0, i)),   # fx(X) flat
                pl.BlockSpec((L, tile), lambda i: (0, i)),   # C slab tile
                pl.BlockSpec((H, L), lambda i: (0, 0)),      # w1 (resident)
                pl.BlockSpec((H, 1), lambda i: (0, 0)),      # b1
                pl.BlockSpec((H, H), lambda i: (0, 0)),      # w2
                pl.BlockSpec((H, 1), lambda i: (0, 0)),      # b2
                pl.BlockSpec((H, 1), lambda i: (0, 0)),      # w3
            ],
            out_specs=pl.BlockSpec((1, tile), lambda i: (0, i)),
        ),
        compiler_params=pltpu.CompilerParams(
            # Tiles are independent: allows sharding the flat T*N axis across
            # v7x's two TensorCores.
            dimension_semantics=("parallel",),
            # Per-step footprint ~ (2*(L+2)*tile + 2*H*tile)*4 B (a few
            # hundred KB at tile=512) -- well inside v7x's 32 MiB scoped VMEM.
            vmem_limit_bytes=32 * 1024 * 1024,
        ),
    )(xout, c_slab, w1, b1, w2, b2, w3)

    return pred_flat[0, :TN].reshape(T, N)


def init_params(key, N, P, L, H):
    """Deterministic init mirroring the PyTorch module's __init__."""
    ks = jax.random.split(key, 7)
    stdv_p = 1.0 / jnp.sqrt(P)
    stdv_l = 1.0 / jnp.sqrt(L)
    stdv_h = 1.0 / jnp.sqrt(H)
    return {
        # fx: weight uniform(0.01*stdv, stdv) as in the module; bias default init
        "wx": jax.random.uniform(ks[0], (N, P), jnp.float32,
                                 minval=0.01 * stdv_p, maxval=stdv_p),
        "bx": jax.random.uniform(ks[1], (N,), jnp.float32,
                                 minval=-stdv_p, maxval=stdv_p),
        # fc[0]: Linear(L, H)
        "w1": jax.random.uniform(ks[2], (H, L), jnp.float32,
                                 minval=-stdv_l, maxval=stdv_l),
        "b1": jax.random.uniform(ks[3], (H,), jnp.float32,
                                 minval=-stdv_l, maxval=stdv_l),
        # fc[2]: Linear(H, H)
        "w2": jax.random.uniform(ks[4], (H, H), jnp.float32,
                                 minval=-stdv_h, maxval=stdv_h),
        "b2": jax.random.uniform(ks[5], (H,), jnp.float32,
                                 minval=-stdv_h, maxval=stdv_h),
        # fc[4]: Linear(H, 1, bias=False)
        "w3": jax.random.uniform(ks[6], (1, H), jnp.float32,
                                 minval=-stdv_h, maxval=stdv_h),
    }


def ref_forward(X, C, p):
    """Pure-JAX reference matching the PyTorch forward exactly."""
    T, N, L = C.shape
    xout = X @ p["wx"].T + p["bx"]
    cf = C.reshape(-1, L)
    h = jnp.tanh(cf @ p["w1"].T + p["b1"])
    h = jnp.tanh(h @ p["w2"].T + p["b2"])
    cout = (h @ p["w3"].T).reshape(T, N)
    return xout + cout


if __name__ == "__main__":
    # Shapes consistent with the module: N units, P plants, L covariates,
    # H hidden units; T timesteps chosen so the flat T*N axis fills full
    # 128-lane vregs and exercises a 2-step grid (T*N = 1024 = 2 x 512 tiles).
    T, N, P, L, H = 128, 8, 4, 4, 16

    key = jax.random.PRNGKey(0)
    k_param, k_x, k_c = jax.random.split(key, 3)

    params = init_params(k_param, N, P, L, H)
    X = jax.random.normal(k_x, (T, P), jnp.float32)
    C = jax.random.normal(k_c, (T, N, L), jnp.float32)

    fwd = jax.jit(model_forward)
    pred = jax.block_until_ready(fwd(X, C, params))
    expected = ref_forward(X, C, params)
    assert pred.shape == (T, N)
    assert jnp.allclose(pred, expected, atol=1e-5, rtol=1e-5), (
        f"max abs err {jnp.max(jnp.abs(pred - expected))}")

    # Toy-size config (T*N = 64 < 128 lanes): exercises the lane-padding path.
    T2 = 8
    X2 = jax.random.normal(jax.random.PRNGKey(1), (T2, P), jnp.float32)
    C2 = jax.random.normal(jax.random.PRNGKey(2), (T2, N, L), jnp.float32)
    pred2 = jax.block_until_ready(fwd(X2, C2, params))
    assert jnp.allclose(pred2, ref_forward(X2, C2, params),
                        atol=1e-5, rtol=1e-5)

    # TODO(synk): tv_loss / shrink_loss / log_barrier / clamp_weights /
    # gravity_penalty are training-time regularizers, not part of forward();
    # not implemented here.
    print("KERNEL_OK")
</pallas_src>

<mosaic_0001>
module attributes {stable_mosaic.version = 11 : i64} {
  func.func @mrf_fc_kernel(%arg0: i32, %arg1: memref<1x512xf32, #tpu.memory_space<vmem>>, %arg2: memref<4x512xf32, #tpu.memory_space<vmem>>, %arg3: memref<16x4xf32, #tpu.memory_space<vmem>>, %arg4: memref<16x1xf32, #tpu.memory_space<vmem>>, %arg5: memref<16x16xf32, #tpu.memory_space<vmem>>, %arg6: memref<16x1xf32, #tpu.memory_space<vmem>>, %arg7: memref<16x1xf32, #tpu.memory_space<vmem>>, %arg8: memref<1x512xf32, #tpu.memory_space<vmem>>) attributes {dimension_semantics = [#tpu.dimension_semantics<parallel>], iteration_bounds = array<i64: 2>, scalar_prefetch = 0 : i64, scratch_operands = 0 : i64, tpu.core_type = #tpu.core_type<tc>, window_params = [{transform_indices = @transform_0, window_bounds = array<i64: 1, 512>}, {transform_indices = @transform_1, window_bounds = array<i64: 4, 512>}, {pipeline_mode = #tpu.pipeline_mode<synchronous>, transform_indices = @transform_2, window_bounds = array<i64: 16, 4>}, {pipeline_mode = #tpu.pipeline_mode<synchronous>, transform_indices = @transform_3, window_bounds = array<i64: 16, 1>}, {pipeline_mode = #tpu.pipeline_mode<synchronous>, transform_indices = @transform_4, window_bounds = array<i64: 16, 16>}, {pipeline_mode = #tpu.pipeline_mode<synchronous>, transform_indices = @transform_5, window_bounds = array<i64: 16, 1>}, {pipeline_mode = #tpu.pipeline_mode<synchronous>, transform_indices = @transform_6, window_bounds = array<i64: 16, 1>}, {transform_indices = @transform_7, window_bounds = array<i64: 1, 512>}]} {
    %c0 = arith.constant 0 : index
    %c0_0 = arith.constant 0 : index
    %0 = vector.load %arg3[%c0, %c0_0] : memref<16x4xf32, #tpu.memory_space<vmem>>, vector<16x4xf32>
    %c0_1 = arith.constant 0 : index
    %c0_2 = arith.constant 0 : index
    %1 = vector.load %arg2[%c0_1, %c0_2] : memref<4x512xf32, #tpu.memory_space<vmem>>, vector<4x512xf32>
    %cst = arith.constant dense<0.000000e+00> : vector<16x512xf32>
    %2 = tpu.matmul %0, %1, %cst {dimension_numbers = #tpu.dot_dimension_numbers<[1], [0], [0], [1], [0, 0, 1, 1], [], []>} : vector<16x4xf32>, vector<4x512xf32>, vector<16x512xf32> -> vector<16x512xf32>
    %c0_3 = arith.constant 0 : index
    %c0_4 = arith.constant 0 : index
    %3 = vector.load %arg4[%c0_3, %c0_4] : memref<16x1xf32, #tpu.memory_space<vmem>>, vector<16x1xf32>
    %4 = vector.broadcast %3 : vector<16x1xf32> to vector<16x512xf32>
    %5 = arith.addf %2, %4 : vector<16x512xf32>
    %6 = math.tanh %5 : vector<16x512xf32>
    %c0_5 = arith.constant 0 : index
    %c0_6 = arith.constant 0 : index
    %7 = vector.load %arg5[%c0_5, %c0_6] : memref<16x16xf32, #tpu.memory_space<vmem>>, vector<16x16xf32>
    %cst_7 = arith.constant dense<0.000000e+00> : vector<16x512xf32>
    %8 = tpu.matmul %7, %6, %cst_7 {dimension_numbers = #tpu.dot_dimension_numbers<[1], [0], [0], [1], [0, 0, 1, 1], [], []>} : vector<16x16xf32>, vector<16x512xf32>, vector<16x512xf32> -> vector<16x512xf32>
    %c0_8 = arith.constant 0 : index
    %c0_9 = arith.constant 0 : index
    %9 = vector.load %arg6[%c0_8, %c0_9] : memref<16x1xf32, #tpu.memory_space<vmem>>, vector<16x1xf32>
    %10 = vector.broadcast %9 : vector<16x1xf32> to vector<16x512xf32>
    %11 = arith.addf %8, %10 : vector<16x512xf32>
    %12 = math.tanh %11 : vector<16x512xf32>
    %c0_10 = arith.constant 0 : index
    %c0_11 = arith.constant 0 : index
    %13 = vector.load %arg7[%c0_10, %c0_11] : memref<16x1xf32, #tpu.memory_space<vmem>>, vector<16x1xf32>
    %14 = vector.broadcast %13 : vector<16x1xf32> to vector<16x512xf32>
    %15 = arith.mulf %14, %12 : vector<16x512xf32>
    %cst_12 = arith.constant dense<0.000000e+00> : vector<512xf32>
    %16 = vector.multi_reduction <add>, %15, %cst_12 [0] : vector<16x512xf32> to vector<512xf32>
    %17 = vector.shape_cast %16 : vector<512xf32> to vector<1x512xf32>
    %c0_13 = arith.constant 0 : index
    %c0_14 = arith.constant 0 : index
    %18 = vector.load %arg1[%c0_13, %c0_14] : memref<1x512xf32, #tpu.memory_space<vmem>>, vector<1x512xf32>
    %19 = arith.addf %18, %17 : vector<1x512xf32>
    %c0_15 = arith.constant 0 : index
    %c0_16 = arith.constant 0 : index
    %20 = vector.load %arg8[%c0_15, %c0_16] : memref<1x512xf32, #tpu.memory_space<vmem>>, vector<1x512xf32>
    tpu.vector_store %arg8[%c0_15, %c0_16], %19 {strides = array<i32>} : memref<1x512xf32, #tpu.memory_space<vmem>>, vector<1x512xf32>,
    return
  }
  func.func @transform_0(%arg0: i32) -> (i32, i32) {
    %c0_i32 = arith.constant 0 : i32
    %c0_i32_0 = arith.constant 0 : i32
    return %c0_i32, %arg0 : i32, i32
  }
  func.func @transform_1(%arg0: i32) -> (i32, i32) {
    %c0_i32 = arith.constant 0 : i32
    %c0_i32_0 = arith.constant 0 : i32
    return %c0_i32, %arg0 : i32, i32
  }
  func.func @transform_2(%arg0: i32) -> (i32, i32) {
    %c0_i32 = arith.constant 0 : i32
    %c0_i32_0 = arith.constant 0 : i32
    %c0_i32_1 = arith.constant 0 : i32
    return %c0_i32, %c0_i32_0 : i32, i32
  }
  func.func @transform_3(%arg0: i32) -> (i32, i32) {
    %c0_i32 = arith.constant 0 : i32
    %c0_i32_0 = arith.constant 0 : i32
    %c0_i32_1 = arith.constant 0 : i32
    return %c0_i32, %c0_i32_0 : i32, i32
  }
  func.func @transform_4(%arg0: i32) -> (i32, i32) {
    %c0_i32 = arith.constant 0 : i32
    %c0_i32_0 = arith.constant 0 : i32
    %c0_i32_1 = arith.constant 0 : i32
    return %c0_i32, %c0_i32_0 : i32, i32
  }
  func.func @transform_5(%arg0: i32) -> (i32, i32) {
    %c0_i32 = arith.constant 0 : i32
    %c0_i32_0 = arith.constant 0 : i32
    %c0_i32_1 = arith.constant 0 : i32
    return %c0_i32, %c0_i32_0 : i32, i32
  }
  func.func @transform_6(%arg0: i32) -> (i32, i32) {
    %c0_i32 = arith.constant 0 : i32
    %c0_i32_0 = arith.constant 0 : i32
    %c0_i32_1 = arith.constant 0 : i32
    return %c0_i32, %c0_i32_0 : i32, i32
  }
  func.func @transform_7(%arg0: i32) -> (i32, i32) {
    %c0_i32 = arith.constant 0 : i32
    %c0_i32_0 = arith.constant 0 : i32
    return %c0_i32, %arg0 : i32, i32
  }
}

</mosaic_0001>

<llo_original>
// kernel: squeeze.1
$region0: #{squeeze.1}
  %s0 = inlined_call_operand.vmem [shape: f32[1024], index: 0, kind: input, shape index: {}]
  %s1 = inlined_call_operand.vmem [shape: f32[128,8], index: 1, kind: output, shape index: {}]
  %v2 = vld [vmem:[%s0] sm:$0xff]
  %vm3 = vcmask 64512
  %4 = vst.msk [vmem:[%s1] ss:$16 sm:$0x3] %vm3, %v2
  %5 = vst.msk [vmem:[%s1] ss:$16 sm:$0xc] %vm3, %v2
  %6 = vst.msk [vmem:[%s1] ss:$16 sm:$0x30] %vm3, %v2
  %7 = vst.msk [vmem:[%s1] ss:$16 sm:$0xc0] %vm3, %v2
  %v8 = vld [vmem:[%s0] sm:$0xff]
  %9 = vrot.lane.b32.xlu0 %v8, 120
  %v10 = vpop.permute.xlu0 %9
  %vm11 = vcmask 64512
  %s12 = scalar_lea.vmem %s1, 1
  %13 = vst.msk [vmem:[%s12] ss:$16 sm:$0x3] %vm11, %v10
  %s14 = scalar_lea.vmem %s1, 1
  %15 = vst.msk [vmem:[%s14] ss:$16 sm:$0xc] %vm11, %v10
  %s16 = scalar_lea.vmem %s1, 1
  %17 = vst.msk [vmem:[%s16] ss:$16 sm:$0x30] %vm11, %v10
  %s18 = scalar_lea.vmem %s1, 1
  %19 = vst.msk [vmem:[%s18] ss:$16 sm:$0xc0] %vm11, %v10
  %v20 = vld [vmem:[%s0] sm:$0xff]
  %21 = vrot.lane.b32.xlu0 %v20, 112
  %v22 = vpop.permute.xlu0 %21
  %vm23 = vcmask 64512
  %s24 = scalar_lea.vmem %s1, 2
  %25 = vst.msk [vmem:[%s24] ss:$16 sm:$0x3] %vm23, %v22
  %s26 = scalar_lea.vmem %s1, 2
  %27 = vst.msk [vmem:[%s26] ss:$16 sm:$0xc] %vm23, %v22
  %s28 = scalar_lea.vmem %s1, 2
  %29 = vst.msk [vmem:[%s28] ss:$16 sm:$0x30] %vm23, %v22
  %s30 = scalar_lea.vmem %s1, 2
  %31 = vst.msk [vmem:[%s30] ss:$16 sm:$0xc0] %vm23, %v22
  %v32 = vld [vmem:[%s0] sm:$0xff]
  %33 = vrot.lane.b32.xlu0 %v32, 104
  %v34 = vpop.permute.xlu0 %33
  %vm35 = vcmask 64512
  %s36 = scalar_lea.vmem %s1, 3
  %37 = vst.msk [vmem:[%s36] ss:$16 sm:$0x3] %vm35, %v34
  %s38 = scalar_lea.vmem %s1, 3
  %39 = vst.msk [vmem:[%s38] ss:$16 sm:$0xc] %vm35, %v34
  %s40 = scalar_lea.vmem %s1, 3
  %41 = vst.msk [vmem:[%s40] ss:$16 sm:$0x30] %vm35, %v34
  %s42 = scalar_lea.vmem %s1, 3
  %43 = vst.msk [vmem:[%s42] ss:$16 sm:$0xc0] %vm35, %v34
  %v44 = vld [vmem:[%s0] sm:$0xff]
  %45 = vrot.lane.b32.xlu0 %v44, 96
  %v46 = vpop.permute.xlu0 %45
  %vm47 = vcmask 64512
  %s48 = scalar_lea.vmem %s1, 4
  %49 = vst.msk [vmem:[%s48] ss:$16 sm:$0x3] %vm47, %v46
  %s50 = scalar_lea.vmem %s1, 4
  %51 = vst.msk [vmem:[%s50] ss:$16 sm:$0xc] %vm47, %v46
  %s52 = scalar_lea.vmem %s1, 4
  %53 = vst.msk [vmem:[%s52] ss:$16 sm:$0x30] %vm47, %v46
  %s54 = scalar_lea.vmem %s1, 4
  %55 = vst.msk [vmem:[%s54] ss:$16 sm:$0xc0] %vm47, %v46
  %v56 = vld [vmem:[%s0] sm:$0xff]
  %57 = vrot.lane.b32.xlu0 %v56, 88
  %v58 = vpop.permute.xlu0 %57
  %vm59 = vcmask 64512
  %s60 = scalar_lea.vmem %s1, 5
  %61 = vst.msk [vmem:[%s60] ss:$16 sm:$0x3] %vm59, %v58
  %s62 = scalar_lea.vmem %s1, 5
  %63 = vst.msk [vmem:[%s62] ss:$16 sm:$0xc] %vm59, %v58
  %s64 = scalar_lea.vmem %s1, 5
  %65 = vst.msk [vmem:[%s64] ss:$16 sm:$0x30] %vm59, %v58
  %s66 = scalar_lea.vmem %s1, 5
  %67 = vst.msk [vmem:[%s66] ss:$16 sm:$0xc0] %vm59, %v58
  %v68 = vld [vmem:[%s0] sm:$0xff]
  %69 = vrot.lane.b32.xlu0 %v68, 80
  %v70 = vpop.permute.xlu0 %69
  %vm71 = vcmask 64512
  %s72 = scalar_lea.vmem %s1, 6
  %73 = vst.msk [vmem:[%s72] ss:$16 sm:$0x3] %vm71, %v70
  %s74 = scalar_lea.vmem %s1, 6
  %75 = vst.msk [vmem:[%s74] ss:$16 sm:$0xc] %vm71, %v70
  %s76 = scalar_lea.vmem %s1, 6
  %77 = vst.msk [vmem:[%s76] ss:$16 sm:$0x30] %vm71, %v70
  %s78 = scalar_lea.vmem %s1, 6
  %79 = vst.msk [vmem:[%s78] ss:$16 sm:$0xc0] %vm71, %v70
  %v80 = vld [vmem:[%s0] sm:$0xff]
  %81 = vrot.lane.b32.xlu0 %v80, 72
  %v82 = vpop.permute.xlu0 %81
  %vm83 = vcmask 64512
  %s84 = scalar_lea.vmem %s1, 7
  %85 = vst.msk [vmem:[%s84] ss:$16 sm:$0x3] %vm83, %v82
  %s86 = scalar_lea.vmem %s1, 7
  %87 = vst.msk [vmem:[%s86] ss:$16 sm:$0xc] %vm83, %v82
  %s88 = scalar_lea.vmem %s1, 7
  %89 = vst.msk [vmem:[%s88] ss:$16 sm:$0x30] %vm83, %v82
  %s90 = scalar_lea.vmem %s1, 7
  %91 = vst.msk [vmem:[%s90] ss:$16 sm:$0xc0] %vm83, %v82
  %v92 = vld [vmem:[%s0] sm:$0xff]
  %93 = vrot.lane.b32.xlu0 %v92, 64
  %v94 = vpop.permute.xlu0 %93
  %vm95 = vcmask 64512
  %s96 = scalar_lea.vmem %s1, 8
  %97 = vst.msk [vmem:[%s96] ss:$16 sm:$0x3] %vm95, %v94
  %s98 = scalar_lea.vmem %s1, 8
  %99 = vst.msk [vmem:[%s98] ss:$16 sm:$0xc] %vm95, %v94
  %s100 = scalar_lea.vmem %s1, 8
  %101 = vst.msk [vmem:[%s100] ss:$16 sm:$0x30] %vm95, %v94
  %s102 = scalar_lea.vmem %s1, 8
  %103 = vst.msk [vmem:[%s102] ss:$16 sm:$0xc0] %vm95, %v94
  %v104 = vld [vmem:[%s0] sm:$0xff]
  %105 = vrot.lane.b32.xlu0 %v104, 56
  %v106 = vpop.permute.xlu0 %105
  %vm107 = vcmask 64512
  %s108 = scalar_lea.vmem %s1, 9
  %109 = vst.msk [vmem:[%s108] ss:$16 sm:$0x3] %vm107, %v106
  %s110 = scalar_lea.vmem %s1, 9
  %111 = vst.msk [vmem:[%s110] ss:$16 sm:$0xc] %vm107, %v106
  %s112 = scalar_lea.vmem %s1, 9
  %113 = vst.msk [vmem:[%s112] ss:$16 sm:$0x30] %vm107, %v106
  %s114 = scalar_lea.vmem %s1, 9
  %115 = vst.msk [vmem:[%s114] ss:$16 sm:$0xc0] %vm107, %v106
  %v116 = vld [vmem:[%s0] sm:$0xff]
  %117 = vrot.lane.b32.xlu0 %v116, 48
  %v118 = vpop.permute.xlu0 %117
  %vm119 = vcmask 64512
  %s120 = scalar_lea.vmem %s1, 10
  %121 = vst.msk [vmem:[%s120] ss:$16 sm:$0x3] %vm119, %v118
  %s122 = scalar_lea.vmem %s1, 10
  %123 = vst.msk [vmem:[%s122] ss:$16 sm:$0xc] %vm119, %v118
  %s124 = scalar_lea.vmem %s1, 10
  %125 = vst.msk [vmem:[%s124] ss:$16 sm:$0x30] %vm119, %v118
  %s126 = scalar_lea.vmem %s1, 10
  %127 = vst.msk [vmem:[%s126] ss:$16 sm:$0xc0] %vm119, %v118
  %v128 = vld [vmem:[%s0] sm:$0xff]
  %129 = vrot.lane.b32.xlu0 %v128, 40
  %v130 = vpop.permute.xlu0 %129
  %vm131 = vcmask 64512
  %s132 = scalar_lea.vmem %s1, 11
  %133 = vst.msk [vmem:[%s132] ss:$16 sm:$0x3] %vm131, %v130
  %s134 = scalar_lea.vmem %s1, 11
  %135 = vst.msk [vmem:[%s134] ss:$16 sm:$0xc] %vm131, %v130
  %s136 = scalar_lea.vmem %s1, 11
  %137 = vst.msk [vmem:[%s136] ss:$16 sm:$0x30] %vm131, %v130
  %s138 = scalar_lea.vmem %s1, 11
  %139 = vst.msk [vmem:[%s138] ss:$16 sm:$0xc0] %vm131, %v130
  %v140 = vld [vmem:[%s0] sm:$0xff]
  %141 = vrot.lane.b32.xlu0 %v140, 32
  %v142 = vpop.permute.xlu0 %141
  %vm143 = vcmask 64512
  %s144 = scalar_lea.vmem %s1, 12
  %145 = vst.msk [vmem:[%s144] ss:$16 sm:$0x3] %vm143, %v142
  %s146 = scalar_lea.vmem %s1, 12
  %147 = vst.msk [vmem:[%s146] ss:$16 sm:$0xc] %vm143, %v142
  %s148 = scalar_lea.vmem %s1, 12
  %149 = vst.msk [vmem:[%s148] ss:$16 sm:$0x30] %vm143, %v142
  %s150 = scalar_lea.vmem %s1, 12
  %151 = vst.msk [vmem:[%s150] ss:$16 sm:$0xc0] %vm143, %v142
  %v152 = vld [vmem:[%s0] sm:$0xff]
  %153 = vrot.lane.b32.xlu0 %v152, 24
  %v154 = vpop.permute.xlu0 %153
  %vm155 = vcmask 64512
  %s156 = scalar_lea.vmem %s1, 13
  %157 = vst.msk [vmem:[%s156] ss:$16 sm:$0x3] %vm155, %v154
  %s158 = scalar_lea.vmem %s1, 13
  %159 = vst.msk [vmem:[%s158] ss:$16 sm:$0xc] %vm155, %v154
  %s160 = scalar_lea.vmem %s1, 13
  %161 = vst.msk [vmem:[%s160] ss:$16 sm:$0x30] %vm155, %v154
  %s162 = scalar_lea.vmem %s1, 13
  %163 = vst.msk [vmem:[%s162] ss:$16 sm:$0xc0] %vm155, %v154
  %v164 = vld [vmem:[%s0] sm:$0xff]
  %165 = vrot.lane.b32.xlu0 %v164, 16
  %v166 = vpop.permute.xlu0 %165
  %vm167 = vcmask 64512
  %s168 = scalar_lea.vmem %s1, 14
  %169 = vst.msk [vmem:[%s168] ss:$16 sm:$0x3] %vm167, %v166
  %s170 = scalar_lea.vmem %s1, 14
  %171 = vst.msk [vmem:[%s170] ss:$16 sm:$0xc] %vm167, %v166
  %s172 = scalar_lea.vmem %s1, 14
  %173 = vst.msk [vmem:[%s172] ss:$16 sm:$0x30] %vm167, %v166
  %s174 = scalar_lea.vmem %s1, 14
  %175 = vst.msk [vmem:[%s174] ss:$16 sm:$0xc0] %vm167, %v166
  %v176 = vld [vmem:[%s0] sm:$0xff]
  %177 = vrot.lane.b32.xlu0 %v176, 8
  %v178 = vpop.permute.xlu0 %177
  %vm179 = vcmask 64512
  %s180 = scalar_lea.vmem %s1, 15
  %181 = vst.msk [vmem:[%s180] ss:$16 sm:$0x3] %vm179, %v178
  %s182 = scalar_lea.vmem %s1, 15
  %183 = vst.msk [vmem:[%s182] ss:$16 sm:$0xc] %vm179, %v178
  %s184 = scalar_lea.vmem %s1, 15
  %185 = vst.msk [vmem:[%s184] ss:$16 sm:$0x30] %vm179, %v178
  %s186 = scalar_lea.vmem %s1, 15
  %187 = vst.msk [vmem:[%s186] ss:$16 sm:$0xc0] %vm179, %v178

// kernel: model_forward.1
$region0: #{model_forward.1}
  #allocation0 [shape = 'u32[]', space=smem, size = 0x4, offset = 0x4, fixed_abs, tag = 'smem constant byte address 0x4 - core index']
  #allocation1 [shape = 'u32[144,128]{1,0:T(1,128)}', space=vmem, size = 0x12000, scoped, tag = 'internal scratch']
  %s0 = inlined_call_operand.vmem [shape: f32[1,1024], index: 0, kind: input, shape index: {}]
  %s1 = inlined_call_operand.vmem [shape: f32[4,1024], index: 1, kind: input, shape index: {}]
  %s2 = inlined_call_operand.vmem [shape: f32[16,4], index: 2, kind: input, shape index: {}]
  %s3 = inlined_call_operand.vmem [shape: f32[16,1], index: 3, kind: input, shape index: {}]
  %s4 = inlined_call_operand.vmem [shape: f32[16,16], index: 4, kind: input, shape index: {}]
  %s5 = inlined_call_operand.vmem [shape: f32[16,1], index: 5, kind: input, shape index: {}]
  %s6 = inlined_call_operand.vmem [shape: f32[16,1], index: 6, kind: input, shape index: {}]
  %s7 = inlined_call_operand.vmem [shape: f32[1,1024], index: 7, kind: output, shape index: {}]
  %s8 = sld [smem:[#allocation0]]
  $region61: #{model_forward.1} parent=0
    _
  %s10 = ssub.s32 1, %s8
  %s11 = scalar_select 0, %s10, %s8
  loop: start=0, step=1, limit=4
  $region2: #{model_forward.1} parent=0 // loop_pre_header
    _
  $region3: #{model_forward.1} parent=0 // loop_header
    %s13 = sphi 0, %s17
    %p14 = scmp.ge.s32.totalorder %s13, 4
    %s23 = sphi 0, %s25
    %s26 = sphi 0, %s23
    %s27 = sphi 0, %s26
    %s43 = sphi 0, %s27
    %s49 = sphi 0, %s51
    %s52 = sphi 0, %s49
    %s53 = sphi 0, %s52
    %s69 = sphi 0, %s53
    %s73 = sphi 0, %s73
    %s75 = sphi 0, %s73
    %s76 = sphi 0, %s75
    %s90 = sphi 0, %s76
    %s94 = sphi 0, %s94
    %s96 = sphi 0, %s94
    %s97 = sphi 0, %s96
    %s111 = sphi 0, %s97
    %s115 = sphi 0, %s115
    %s117 = sphi 0, %s115
    %s118 = sphi 0, %s117
    %s132 = sphi 0, %s118
    %s136 = sphi 0, %s136
    %s138 = sphi 0, %s136
    %s139 = sphi 0, %s138
    %s153 = sphi 0, %s139
    %s157 = sphi 0, %s157
    %s159 = sphi 0, %s157
    %s160 = sphi 0, %s159
    %s174 = sphi 0, %s160
    %s180 = sphi 0, %s182
    %s183 = sphi 0, %s180
    %s184 = sphi 0, %s183
    %s200 = sphi 0, %s184
  $region4: #{model_forward.1} parent=0 // loop_header_branch
    %16 = sbr.rel (%p14) target = $region8
  $region5: #{model_forward.1} parent=0 // loop_body
    %s18 = ssub.s32 %s13, 1
    %s19 = ssub.s32 %s13, 2
    %s20 = sadd.s32 %s13, 1
    %s21 = ssub.s32 %s13, %s20
    %p22 = scmp.eq.s32.totalorder %s21, 0
    %s24 = sadd.s32 %s23, 1
    %s25 = scalar_select %p22, %s23, %s24
    %p28 = pneg %p22
    %p29 = scmp.eq.s32.totalorder %s13, 1
    %p30 = por %p28, %p29
    %p31 = scmp.ne.s32.totalorder %s23, %s26
    %p32 = scmp.eq.s32.totalorder %s13, 0
    %p33 = por %p31, %p32
    %p34 = scmp.ne.s32.totalorder %s23, %s26
    %p35 = scmp.eq.s32.totalorder %s18, 1
    %p36 = por %p34, %p35
    %p37 = scmp.ne.s32.totalorder %s26, %s27
    %p38 = scmp.eq.s32.totalorder %s18, 0
    %p39 = por %p37, %p38
    %p40 = scmp.ne.s32.totalorder %s26, %s27
    %p41 = scmp.eq.s32.totalorder %s19, 1
    %p42 = por %p40, %p41
    %p44 = scmp.ne.s32.totalorder %s27, %s43
    %p45 = scmp.eq.s32.totalorder %s19, 0
    %p46 = por %p44, %p45
    %s47 = ssub.s32 %s13, %s20
    %p48 = scmp.eq.s32.totalorder %s47, 0
    %s50 = sadd.s32 %s49, 1
    %s51 = scalar_select %p48, %s49, %s50
    %p54 = pneg %p48
    %p55 = scmp.eq.s32.totalorder %s13, 1
    %p56 = por %p54, %p55
    %p57 = scmp.ne.s32.totalorder %s49, %s52
    %p58 = scmp.eq.s32.totalorder %s13, 0
    %p59 = por %p57, %p58
    %p60 = scmp.ne.s32.totalorder %s49, %s52
    %p61 = scmp.eq.s32.totalorder %s18, 1
    %p62 = por %p60, %p61
    %p63 = scmp.ne.s32.totalorder %s52, %s53
    %p64 = scmp.eq.s32.totalorder %s18, 0
    %p65 = por %p63, %p64
    %p66 = scmp.ne.s32.totalorder %s52, %s53
    %p67 = scmp.eq.s32.totalorder %s19, 1
    %p68 = por %p66, %p67
    %p70 = scmp.ne.s32.totalorder %s53, %s69
    %p71 = scmp.eq.s32.totalorder %s19, 0
    %p72 = por %p70, %p71
    %s74 = sadd.s32 %s73, 1
    %p77 = scmp.eq.s32.totalorder %s13, 1
    %p78 = scmp.ne.s32.totalorder %s73, %s75
    %p79 = scmp.eq.s32.totalorder %s13, 0
    %p80 = por %p78, %p79
    %p81 = scmp.ne.s32.totalorder %s73, %s75
    %p82 = scmp.eq.s32.totalorder %s18, 1
    %p83 = por %p81, %p82
    %p84 = scmp.ne.s32.totalorder %s75, %s76
    %p85 = scmp.eq.s32.totalorder %s18, 0
    %p86 = por %p84, %p85
    %p87 = scmp.ne.s32.totalorder %s75, %s76
    %p88 = scmp.eq.s32.totalorder %s19, 1
    %p89 = por %p87, %p88
    %p91 = scmp.ne.s32.totalorder %s76, %s90
    %p92 = scmp.eq.s32.totalorder %s19, 0
    %p93 = por %p91, %p92
    %s95 = sadd.s32 %s94, 1
    %p98 = scmp.eq.s32.totalorder %s13, 1
    %p99 = scmp.ne.s32.totalorder %s94, %s96
    %p100 = scmp.eq.s32.totalorder %s13, 0
    %p101 = por %p99, %p100
    %p102 = scmp.ne.s32.totalorder %s94, %s96
    %p103 = scmp.eq.s32.totalorder %s18, 1
    %p104 = por %p102, %p103
    %p105 = scmp.ne.s32.totalorder %s96, %s97
    %p106 = scmp.eq.s32.totalorder %s18, 0
    %p107 = por %p105, %p106
    %p108 = scmp.ne.s32.totalorder %s96, %s97
    %p109 = scmp.eq.s32.totalorder %s19, 1
    %p110 = por %p108, %p109
    %p112 = scmp.ne.s32.totalorder %s97, %s111
    %p113 = scmp.eq.s32.totalorder %s19, 0
    %p114 = por %p112, %p113
    %s116 = sadd.s32 %s115, 1
    %p119 = scmp.eq.s32.totalorder %s13, 1
    %p120 = scmp.ne.s32.totalorder %s115, %s117
    %p121 = scmp.eq.s32.totalorder %s13, 0
    %p122 = por %p120, %p121
    %p123 = scmp.ne.s32.totalorder %s115, %s117
    %p124 = scmp.eq.s32.totalorder %s18, 1
    %p125 = por %p123, %p124
    %p126 = scmp.ne.s32.totalorder %s117, %s118
    %p127 = scmp.eq.s32.totalorder %s18, 0
    %p128 = por %p126, %p127
    %p129 = scmp.ne.s32.totalorder %s117, %s118
    %p130 = scmp.eq.s32.totalorder %s19, 1
    %p131 = por %p129, %p130
    %p133 = scmp.ne.s32.totalorder %s118, %s132
    %p134 = scmp.eq.s32.totalorder %s19, 0
    %p135 = por %p133, %p134
    %s137 = sadd.s32 %s136, 1
    %p140 = scmp.eq.s32.totalorder %s13, 1
    %p141 = scmp.ne.s32.totalorder %s136, %s138
    %p142 = scmp.eq.s32.totalorder %s13, 0
    %p143 = por %p141, %p142
    %p144 = scmp.ne.s32.totalorder %s136, %s138
    %p145 = scmp.eq.s32.totalorder %s18, 1
    %p146 = por %p144, %p145
    %p147 = scmp.ne.s32.totalorder %s138, %s139
    %p148 = scmp.eq.s32.totalorder %s18, 0
    %p149 = por %p147, %p148
    %p150 = scmp.ne.s32.totalorder %s138, %s139
    %p151 = scmp.eq.s32.totalorder %s19, 1
    %p152 = por %p150, %p151
    %p154 = scmp.ne.s32.totalorder %s139, %s153
    %p155 = scmp.eq.s32.totalorder %s19, 0
    %p156 = por %p154, %p155
    %s158 = sadd.s32 %s157, 1
    %p161 = scmp.eq.s32.totalorder %s13, 1
    %p162 = scmp.ne.s32.totalorder %s157, %s159
    %p163 = scmp.eq.s32.totalorder %s13, 0
    %p164 = por %p162, %p163
    %p165 = scmp.ne.s32.totalorder %s157, %s159
    %p166 = scmp.eq.s32.totalorder %s18, 1
    %p167 = por %p165, %p166
    %p168 = scmp.ne.s32.totalorder %s159, %s160
    %p169 = scmp.eq.s32.totalorder %s18, 0
    %p170 = por %p168, %p169
    %p171 = scmp.ne.s32.totalorder %s159, %s160
    %p172 = scmp.eq.s32.totalorder %s19, 1
    %p173 = por %p171, %p172
    %p175 = scmp.ne.s32.totalorder %s160, %s174
    %p176 = scmp.eq.s32.totalorder %s19, 0
    %p177 = por %p175, %p176
    %s178 = ssub.s32 %s13, %s20
    %p179 = scmp.eq.s32.totalorder %s178, 0
    %s181 = sadd.s32 %s180, 1
    %s182 = scalar_select %p179, %s180, %s181
    %p185 = pneg %p179
    %p186 = scmp.eq.s32.totalorder %s13, 1
    %p187 = por %p185, %p186
    %p188 = scmp.ne.s32.totalorder %s180, %s183
    %p189 = scmp.eq.s32.totalorder %s13, 0
    %p190 = por %p188, %p189
    %p191 = scmp.ne.s32.totalorder %s180, %s183
    %p192 = scmp.eq.s32.totalorder %s18, 1
    %p193 = por %p191, %p192
    %p194 = scmp.ne.s32.totalorder %s183, %s184
    %p195 = scmp.eq.s32.totalorder %s18, 0
    %p196 = por %p194, %p195
    %p197 = scmp.ne.s32.totalorder %s183, %s184
    %p198 = scmp.eq.s32.totalorder %s19, 1
    %p199 = por %p197, %p198
    %p201 = scmp.ne.s32.totalorder %s184, %s200
    %p202 = scmp.eq.s32.totalorder %s19, 0
    %p203 = por %p201, %p202
    %p204 = scmp.le.s32.totalorder 1, %s13
    %p205 = scmp.lt.s32.totalorder %s13, 3
    %p206 = pnand %p204, %p205
    %p207 = pneg %p206
    // Predicated region
    $region9: #{model_forward.1} parent=5 // pred_check
      _
    $region10: #{model_forward.1} parent=5 // pred_check_branch
      %209 = sbr.rel (%p206) target = $region12
    $region11: #{model_forward.1} parent=5 // pred_region
      %s210 = ssub.s32 %s13, 1
      // Predicated region
      $region13: #{model_forward.1} parent=11 // pred_check
        %p211 = pneg %p86
      $region14: #{model_forward.1} parent=11 // pred_check_branch
        %213 = sbr.rel (%p211) target = $region16
      $region15: #{model_forward.1} parent=11 // pred_region
        _
      $region16: #{model_forward.1} parent=11 // pred_fallthru
        _
      // Predicated region
      $region17: #{model_forward.1} parent=11 // pred_check
        %p214 = pneg %p107
      $region18: #{model_forward.1} parent=11 // pred_check_branch
        %216 = sbr.rel (%p214) target = $region20
      $region19: #{model_forward.1} parent=11 // pred_region
        _
      $region20: #{model_forward.1} parent=11 // pred_fallthru
        _
      // Predicated region
      $region21: #{model_forward.1} parent=11 // pred_check
        %p217 = pneg %p128
      $region22: #{model_forward.1} parent=11 // pred_check_branch
        %219 = sbr.rel (%p217) target = $region24
      $region23: #{model_forward.1} parent=11 // pred_region
        _
      $region24: #{model_forward.1} parent=11 // pred_fallthru
        _
      // Predicated region
      $region25: #{model_forward.1} parent=11 // pred_check
        %p220 = pneg %p149
      $region26: #{model_forward.1} parent=11 // pred_check_branch
        %222 = sbr.rel (%p220) target = $region28
      $region27: #{model_forward.1} parent=11 // pred_region
        _
      $region28: #{model_forward.1} parent=11 // pred_fallthru
        _
      // Predicated region
      $region29: #{model_forward.1} parent=11 // pred_check
        %p223 = pneg %p170
      $region30: #{model_forward.1} parent=11 // pred_check_branch
        %225 = sbr.rel (%p223) target = $region32
      $region31: #{model_forward.1} parent=11 // pred_region
        _
      $region32: #{model_forward.1} parent=11 // pred_fallthru
        _
    $region12: #{model_forward.1} parent=5 // pred_fallthru
      _
    %p226 = scmp.lt.s32.totalorder %s13, 2
    // Predicated region
    $region33: #{model_forward.1} parent=5 // pred_check
      %p227 = pneg %p226
    $region34: #{model_forward.1} parent=5 // pred_check_branch
      %229 = sbr.rel (%p227) target = $region36
    $region35: #{model_forward.1} parent=5 // pred_region
      // Predicated region
      $region37: #{model_forward.1} parent=35 // pred_check
        %p230 = pneg %p33
      $region38: #{model_forward.1} parent=35 // pred_check_branch
        %232 = sbr.rel (%p230) target = $region40
      $region39: #{model_forward.1} parent=35 // pred_region
        %s233 = smul.u32 4, %s13
        %p234 = scmp.lt.s32.totalorder %s233, 7
        %s235 = scalar_select %p234, %s233, 7
        %s236 = scalar_lea.vmem %s0, %s235
        %s237 = smul.u32 4, %s13
      $region40: #{model_forward.1} parent=35 // pred_fallthru
        _
      // Predicated region
      $region41: #{model_forward.1} parent=35 // pred_check
        %p238 = pneg %p59
      $region42: #{model_forward.1} parent=35 // pred_check_branch
        %240 = sbr.rel (%p238) target = $region44
      $region43: #{model_forward.1} parent=35 // pred_region
        %s241 = smul.u32 4, %s13
        %p242 = scmp.lt.s32.totalorder %s241, 7
        %s243 = scalar_select %p242, %s241, 7
        %s244 = smul.addr %s243, 4
        %s245 = scalar_lea.vmem %s1, %s244
        %s246 = smul.u32 4, %s13
      $region44: #{model_forward.1} parent=35 // pred_fallthru
        _
    $region36: #{model_forward.1} parent=5 // pred_fallthru
      _
    %p247 = scmp.le.s32.totalorder 1, %s13
    %p248 = scmp.lt.s32.totalorder %s13, 3
    %p249 = pnand %p247, %p248
    %p250 = pneg %p249
    // Predicated region
    $region45: #{model_forward.1} parent=5 // pred_check
      _
    $region46: #{model_forward.1} parent=5 // pred_check_branch
      %252 = sbr.rel (%p249) target = $region48
    $region47: #{model_forward.1} parent=5 // pred_region
      %s253 = ssub.s32 %s13, 1
      %s254 = smul.u32 4, %s18
      %p255 = scmp.lt.s32.totalorder %s254, 7
      %s256 = scalar_select %p255, %s254, 7
      %s257 = scalar_lea.vmem %s0, %s256
      %p258 = pneg %p39
      %p259 = pneg %p36
      %s260 = smul.u32 4, %s18
      %p261 = scmp.lt.s32.totalorder %s260, 7
      %s262 = scalar_select %p261, %s260, 7
      %s263 = smul.addr %s262, 4
      %s264 = scalar_lea.vmem %s1, %s263
      %p265 = pneg %p65
      %p266 = pneg %p62
      %p267 = pneg %p86
      %p268 = pneg %p83
      %p269 = pneg %p107
      %p270 = pneg %p104
      %p271 = pneg %p128
      %p272 = pneg %p125
      %p273 = pneg %p149
      %p274 = pneg %p146
      %p275 = pneg %p170
      %p276 = pneg %p167
      %p277 = pneg %p196
      %p278 = pneg %p193
      %s279 = smul.u32 4, %s18
      %p280 = scmp.lt.s32.totalorder %s279, 7
      %s281 = scalar_select %p280, %s279, 7
      %s282 = scalar_lea.vmem %s7, %s281
      %s283 = smul.u32 4, %s18
      %p284 = scmp.lt.s32.totalorder %s283, 7
      %s285 = scalar_select %p284, %s283, 7
      %s286 = scalar_lea.vmem %s0, %s285
      %s287 = smul.u32 4, %s18
      %s288 = smul.u32 4, %s18
      %p289 = scmp.lt.s32.totalorder %s288, 7
      %s290 = scalar_select %p289, %s288, 7
      %s291 = smul.addr %s290, 4
      %s292 = scalar_lea.vmem %s1, %s291
      %s293 = smul.u32 4, %s18
      %s294 = smul.u32 4, %s18
      %p295 = scmp.lt.s32.totalorder %s294, 7
      %s296 = scalar_select %p295, %s294, 7
      %s297 = scalar_lea.vmem %s7, %s296
      %s298 = smul.u32 4, %s18
      %v299 = vld [vmem:[%s2] sm:$0xff]
      %v300 = vld [vmem:[%s2 + $0x8] sm:$0xff]
      %v301 = vld [vmem:[%s292] sm:$0xff]
      %v302 = vld [vmem:[%s292 + $0x8] sm:$0xff]
      %v303 = vld [vmem:[%s3] sm:$0xff]
      %v304 = vld [vmem:[%s3 + $0x8] sm:$0xff]
      %306 = vset.pattern.permute.xlu0 0
      %307 = vperm.xlu0 %306, %v303
      %v308 = vpop.permute.xlu0 %307
      %311 = vset.pattern.permute.xlu0 0
      %312 = vperm.xlu0 %311, %v304
      %v313 = vpop.permute.xlu0 %312
      %v317 = vcombine.high %v301, %v301
      %v318 = vcombine.high %v302, %v302
      %vm319 = vcmask 31744
      %v321 = vsel %vm319, %v299, 0
      %v324 = vsel %vm319, %v300, 0
      %vm326 = vcmask 1043456
      %v327 = vsel %vm326, %v301, 0
      %v329 = vsel %vm326, %v317, 0
      %v331 = vsel %vm326, %v302, 0
      %v333 = vsel %vm326, %v318, 0
      %335 = vmatprep.subr.mxu0 %v329
      %336 = vmatpush1.msra.mxu0 %v327
      %337 = vmatprep.subr.mxu0 0.0
      %338 = vmatpush1.msra.mxu0 0.0
      %339 = vmatprep.subr.mxu0 0.0
      %340 = vmatpush1.msra.mxu0 0.0
      %341 = vmatprep.subr.mxu0 0.0
      %342 = vmatpush1.msra.mxu0 0.0
      %343 = vmatprep.subr.mxu0 0.0
      %344 = vmatpush1.msra.mxu0 0.0
      %345 = vmatprep.subr.mxu0 0.0
      %346 = vmatpush1.msra.mxu0 0.0
      %347 = vmatprep.subr.mxu0 0.0
      %348 = vmatpush1.msra.mxu0 0.0
      %349 = vmatprep.subr.mxu0 0.0
      %350 = vmatpush1.msra.mxu0 0.0
      %351 = vmatprep.subr.mxu0 0.0
      %352 = vmatpush1.msra.mxu0 0.0
      %353 = vmatprep.subr.mxu0 0.0
      %354 = vmatpush1.msra.mxu0 0.0
      %355 = vmatprep.subr.mxu0 0.0
      %356 = vmatpush1.msra.mxu0 0.0
      %357 = vmatprep.subr.mxu0 0.0
      %358 = vmatpush1.msra.mxu0 0.0
      %359 = vmatprep.subr.mxu0 0.0
      %360 = vmatpush1.msra.mxu0 0.0
      %361 = vmatprep.subr.mxu0 0.0
      %362 = vmatpush1.msra.mxu0 0.0
      %363 = vmatprep.subr.mxu0 0.0
      %364 = vmatpush1.msra.mxu0 0.0
      %365 = vmatprep.subr.mxu0 0.0
      %366 = vmatpush1.msra.mxu0 0.0
      %367 = vmatprep.subr.mxu0 0.0
      %368 = vmatpush1.msra.mxu0 0.0
      %369 = vmatprep.subr.mxu0 0.0
      %370 = vmatpush1.msra.mxu0 0.0
      %371 = vmatprep.subr.mxu0 0.0
      %372 = vmatpush1.msra.mxu0 0.0
      %373 = vmatprep.subr.mxu0 0.0
      %374 = vmatpush1.msra.mxu0 0.0
      %375 = vmatprep.subr.mxu0 0.0
      %376 = vmatpush1.msra.mxu0 0.0
      %377 = vmatprep.subr.mxu0 0.0
      %378 = vmatpush1.msra.mxu0 0.0
      %379 = vmatprep.subr.mxu0 0.0
      %380 = vmatpush1.msra.mxu0 0.0
      %381 = vmatprep.subr.mxu0 0.0
      %382 = vmatpush1.msra.mxu0 0.0
      %383 = vmatprep.subr.mxu0 0.0
      %384 = vmatpush1.msra.mxu0 0.0
      %385 = vmatprep.subr.mxu0 0.0
      %386 = vmatpush1.msra.mxu0 0.0
      %387 = vmatprep.subr.mxu0 0.0
      %388 = vmatpush1.msra.mxu0 0.0
      %389 = vmatprep.subr.mxu0 0.0
      %390 = vmatpush1.msra.mxu0 0.0
      %391 = vmatprep.subr.mxu0 0.0
      %392 = vmatpush1.msra.mxu0 0.0
      %393 = vmatprep.subr.mxu0 0.0
      %394 = vmatpush1.msra.mxu0 0.0
      %395 = vmatprep.subr.mxu0 0.0
      %396 = vmatpush1.msra.mxu0 0.0
      %397 = vmatprep.subr.mxu0 0.0
      %398 = vmatpush1.msra.mxu0 0.0
      %399 = vmatprep.mubr.f32.mxu0 0.0
      %400 = vmatmul.mubr.f32.gmra.mrb[0].mxu0 %v321
      %v401 = vpop.f32.mrb[0].mxu0
      %v402 = vadd.f32 %v308, %v401
      %v403 = vpop.f32.mrb[0].mxu0
      %v404 = vadd.f32 %v308, %v403
      %405 = vmatprep.mubr.f32.mxu0 0.0
      %406 = vmatmul.mubr.f32.gmra.mrb[0].mxu0 %v324
      %v407 = vpop.f32.mrb[0].mxu0
      %v408 = vadd.f32 %v313, %v407
      %v409 = vpop.f32.mrb[0].mxu0
      %v410 = vadd.f32 %v313, %v409
      %411 = vdwg.mxu0
      %412 = vmatprep.subr.mxu0 %v333
      %413 = vmatpush1.msra.mxu0 %v331
      %414 = vmatprep.subr.mxu0 0.0
      %415 = vmatpush1.msra.mxu0 0.0
      %416 = vmatprep.subr.mxu0 0.0
      %417 = vmatpush1.msra.mxu0 0.0
      %418 = vmatprep.subr.mxu0 0.0
      %419 = vmatpush1.msra.mxu0 0.0
      %420 = vmatprep.subr.mxu0 0.0
      %421 = vmatpush1.msra.mxu0 0.0
      %422 = vmatprep.subr.mxu0 0.0
      %423 = vmatpush1.msra.mxu0 0.0
      %424 = vmatprep.subr.mxu0 0.0
      %425 = vmatpush1.msra.mxu0 0.0
      %426 = vmatprep.subr.mxu0 0.0
      %427 = vmatpush1.msra.mxu0 0.0
      %428 = vmatprep.subr.mxu0 0.0
      %429 = vmatpush1.msra.mxu0 0.0
      %430 = vmatprep.subr.mxu0 0.0
      %431 = vmatpush1.msra.mxu0 0.0
      %432 = vmatprep.subr.mxu0 0.0
      %433 = vmatpush1.msra.mxu0 0.0
      %434 = vmatprep.subr.mxu0 0.0
      %435 = vmatpush1.msra.mxu0 0.0
      %436 = vmatprep.subr.mxu0 0.0
      %437 = vmatpush1.msra.mxu0 0.0
      %438 = vmatprep.subr.mxu0 0.0
      %439 = vmatpush1.msra.mxu0 0.0
      %440 = vmatprep.subr.mxu0 0.0
      %441 = vmatpush1.msra.mxu0 0.0
      %442 = vmatprep.subr.mxu0 0.0
      %443 = vmatpush1.msra.mxu0 0.0
      %444 = vmatprep.subr.mxu0 0.0
      %445 = vmatpush1.msra.mxu0 0.0
      %446 = vmatprep.subr.mxu0 0.0
      %447 = vmatpush1.msra.mxu0 0.0
      %448 = vmatprep.subr.mxu0 0.0
      %449 = vmatpush1.msra.mxu0 0.0
      %450 = vmatprep.subr.mxu0 0.0
      %451 = vmatpush1.msra.mxu0 0.0
      %452 = vmatprep.subr.mxu0 0.0
      %453 = vmatpush1.msra.mxu0 0.0
      %454 = vmatprep.subr.mxu0 0.0
      %455 = vmatpush1.msra.mxu0 0.0
      %456 = vmatprep.subr.mxu0 0.0
      %457 = vmatpush1.msra.mxu0 0.0
      %458 = vmatprep.subr.mxu0 0.0
      %459 = vmatpush1.msra.mxu0 0.0
      %460 = vmatprep.subr.mxu0 0.0
      %461 = vmatpush1.msra.mxu0 0.0
      %462 = vmatprep.subr.mxu0 0.0
      %463 = vmatpush1.msra.mxu0 0.0
      %464 = vmatprep.subr.mxu0 0.0
      %465 = vmatpush1.msra.mxu0 0.0
      %466 = vmatprep.subr.mxu0 0.0
      %467 = vmatpush1.msra.mxu0 0.0
      %468 = vmatprep.subr.mxu0 0.0
      %469 = vmatpush1.msra.mxu0 0.0
      %470 = vmatprep.subr.mxu0 0.0
      %471 = vmatpush1.msra.mxu0 0.0
      %472 = vmatprep.subr.mxu0 0.0
      %473 = vmatpush1.msra.mxu0 0.0
      %474 = vmatprep.subr.mxu0 0.0
      %475 = vmatpush1.msra.mxu0 0.0
      %476 = vmatprep.mubr.f32.mxu0 0.0
      %477 = vmatmul.mubr.f32.gmra.mrb[0].mxu0 %v321
      %v478 = vpop.f32.mrb[0].mxu0
      %v479 = vadd.f32 %v308, %v478
      %v480 = vpop.f32.mrb[0].mxu0
      %v481 = vadd.f32 %v308, %v480
      %482 = vmatprep.mubr.f32.mxu0 0.0
      %483 = vmatmul.mubr.f32.gmra.mrb[0].mxu0 %v324
      %v484 = vpop.f32.mrb[0].mxu0
      %v485 = vadd.f32 %v313, %v484
      %v486 = vpop.f32.mrb[0].mxu0
      %v487 = vadd.f32 %v313, %v486
      %488 = vdwg.mxu0
      %v489 = vtanh.pop %v402
      %v490 = vtanh.pop %v404
      %v491 = vtanh.pop %v479
      %v492 = vtanh.pop %v481
      %v493 = vtanh.pop %v408
      %v494 = vtanh.pop %v410
      %v495 = vtanh.pop %v485
      %v496 = vtanh.pop %v487
      %v497 = vld [vmem:[%s4] sm:$0xff]
      %v498 = vld [vmem:[%s4 + $0x8] sm:$0xff]
      %v499 = vld [vmem:[%s5] sm:$0xff]
      %v500 = vld [vmem:[%s5 + $0x8] sm:$0xff]
      %502 = vset.pattern.permute.xlu0 0
      %503 = vperm.xlu0 %502, %v499
      %v504 = vpop.permute.xlu0 %503
      %507 = vset.pattern.permute.xlu0 0
      %508 = vperm.xlu0 %507, %v500
      %v509 = vpop.permute.xlu0 %508
      %vm511 = vcmask 130048
      %v513 = vsel %vm511, %v497, 0
      %v516 = vsel %vm511, %v498, 0
      %518 = vmatprep.subr.mxu0 %v490
      %519 = vmatpush1.msra.mxu0 %v489
      %520 = vmatprep.subr.mxu0 %v494
      %521 = vmatpush1.msra.mxu0 %v493
      %522 = vmatprep.subr.mxu0 0.0
      %523 = vmatpush1.msra.mxu0 0.0
      %524 = vmatprep.subr.mxu0 0.0
      %525 = vmatpush1.msra.mxu0 0.0
      %526 = vmatprep.subr.mxu0 0.0
      %527 = vmatpush1.msra.mxu0 0.0
      %528 = vmatprep.subr.mxu0 0.0
      %529 = vmatpush1.msra.mxu0 0.0
      %530 = vmatprep.subr.mxu0 0.0
      %531 = vmatpush1.msra.mxu0 0.0
      %532 = vmatprep.subr.mxu0 0.0
      %533 = vmatpush1.msra.mxu0 0.0
      %534 = vmatprep.subr.mxu0 0.0
      %535 = vmatpush1.msra.mxu0 0.0
      %536 = vmatprep.subr.mxu0 0.0
      %537 = vmatpush1.msra.mxu0 0.0
      %538 = vmatprep.subr.mxu0 0.0
      %539 = vmatpush1.msra.mxu0 0.0
      %540 = vmatprep.subr.mxu0 0.0
      %541 = vmatpush1.msra.mxu0 0.0
      %542 = vmatprep.subr.mxu0 0.0
      %543 = vmatpush1.msra.mxu0 0.0
      %544 = vmatprep.subr.mxu0 0.0
      %545 = vmatpush1.msra.mxu0 0.0
      %546 = vmatprep.subr.mxu0 0.0
      %547 = vmatpush1.msra.mxu0 0.0
      %548 = vmatprep.subr.mxu0 0.0
      %549 = vmatpush1.msra.mxu0 0.0
      %550 = vmatprep.subr.mxu0 0.0
      %551 = vmatpush1.msra.mxu0 0.0
      %552 = vmatprep.subr.mxu0 0.0
      %553 = vmatpush1.msra.mxu0 0.0
      %554 = vmatprep.subr.mxu0 0.0
      %555 = vmatpush1.msra.mxu0 0.0
      %556 = vmatprep.subr.mxu0 0.0
      %557 = vmatpush1.msra.mxu0 0.0
      %558 = vmatprep.subr.mxu0 0.0
      %559 = vmatpush1.msra.mxu0 0.0
      %560 = vmatprep.subr.mxu0 0.0
      %561 = vmatpush1.msra.mxu0 0.0
      %562 = vmatprep.subr.mxu0 0.0
      %563 = vmatpush1.msra.mxu0 0.0
      %564 = vmatprep.subr.mxu0 0.0
      %565 = vmatpush1.msra.mxu0 0.0
      %566 = vmatprep.subr.mxu0 0.0
      %567 = vmatpush1.msra.mxu0 0.0
      %568 = vmatprep.subr.mxu0 0.0
      %569 = vmatpush1.msra.mxu0 0.0
      %570 = vmatprep.subr.mxu0 0.0
      %571 = vmatpush1.msra.mxu0 0.0
      %572 = vmatprep.subr.mxu0 0.0
      %573 = vmatpush1.msra.mxu0 0.0
      %574 = vmatprep.subr.mxu0 0.0
      %575 = vmatpush1.msra.mxu0 0.0
      %576 = vmatprep.subr.mxu0 0.0
      %577 = vmatpush1.msra.mxu0 0.0
      %578 = vmatprep.subr.mxu0 0.0
      %579 = vmatpush1.msra.mxu0 0.0
      %580 = vmatprep.subr.mxu0 0.0
      %581 = vmatpush1.msra.mxu0 0.0
      %582 = vmatprep.mubr.f32.mxu0 0.0
      %583 = vmatmul.mubr.f32.gmra.mrb[0].mxu0 %v513
      %v584 = vpop.f32.mrb[0].mxu0
      %v585 = vadd.f32 %v504, %v584
      %v586 = vpop.f32.mrb[0].mxu0
      %v587 = vadd.f32 %v504, %v586
      %588 = vmatprep.mubr.f32.mxu0 0.0
      %589 = vmatmul.mubr.f32.gmra.mrb[0].mxu0 %v516
      %v590 = vpop.f32.mrb[0].mxu0
      %v591 = vadd.f32 %v509, %v590
      %v592 = vpop.f32.mrb[0].mxu0
      %v593 = vadd.f32 %v509, %v592
      %594 = vdwg.mxu0
      %595 = vmatprep.subr.mxu0 %v492
      %596 = vmatpush1.msra.mxu0 %v491
      %597 = vmatprep.subr.mxu0 %v496
      %598 = vmatpush1.msra.mxu0 %v495
      %599 = vmatprep.subr.mxu0 0.0
      %600 = vmatpush1.msra.mxu0 0.0
      %601 = vmatprep.subr.mxu0 0.0
      %602 = vmatpush1.msra.mxu0 0.0
      %603 = vmatprep.subr.mxu0 0.0
      %604 = vmatpush1.msra.mxu0 0.0
      %605 = vmatprep.subr.mxu0 0.0
      %606 = vmatpush1.msra.mxu0 0.0
      %607 = vmatprep.subr.mxu0 0.0
      %608 = vmatpush1.msra.mxu0 0.0
      %609 = vmatprep.subr.mxu0 0.0
      %610 = vmatpush1.msra.mxu0 0.0
      %611 = vmatprep.subr.mxu0 0.0
      %612 = vmatpush1.msra.mxu0 0.0
      %613 = vmatprep.subr.mxu0 0.0
      %614 = vmatpush1.msra.mxu0 0.0
      %615 = vmatprep.subr.mxu0 0.0
      %616 = vmatpush1.msra.mxu0 0.0
      %617 = vmatprep.subr.mxu0 0.0
      %618 = vmatpush1.msra.mxu0 0.0
      %619 = vmatprep.subr.mxu0 0.0
      %620 = vmatpush1.msra.mxu0 0.0
      %621 = vmatprep.subr.mxu0 0.0
      %622 = vmatpush1.msra.mxu0 0.0
      %623 = vmatprep.subr.mxu0 0.0
      %624 = vmatpush1.msra.mxu0 0.0
      %625 = vmatprep.subr.mxu0 0.0
      %626 = vmatpush1.msra.mxu0 0.0
      %627 = vmatprep.subr.mxu0 0.0
      %628 = vmatpush1.msra.mxu0 0.0
      %629 = vmatprep.subr.mxu0 0.0
      %630 = vmatpush1.msra.mxu0 0.0
      %631 = vmatprep.subr.mxu0 0.0
      %632 = vmatpush1.msra.mxu0 0.0
      %633 = vmatprep.subr.mxu0 0.0
      %634 = vmatpush1.msra.mxu0 0.0
      %635 = vmatprep.subr.mxu0 0.0
      %636 = vmatpush1.msra.mxu0 0.0
      %637 = vmatprep.subr.mxu0 0.0
      %638 = vmatpush1.msra.mxu0 0.0
      %639 = vmatprep.subr.mxu0 0.0
      %640 = vmatpush1.msra.mxu0 0.0
      %641 = vmatprep.subr.mxu0 0.0
      %642 = vmatpush1.msra.mxu0 0.0
      %643 = vmatprep.subr.mxu0 0.0
      %644 = vmatpush1.msra.mxu0 0.0
      %645 = vmatprep.subr.mxu0 0.0
      %646 = vmatpush1.msra.mxu0 0.0
      %647 = vmatprep.subr.mxu0 0.0
      %648 = vmatpush1.msra.mxu0 0.0
      %649 = vmatprep.subr.mxu0 0.0
      %650 = vmatpush1.msra.mxu0 0.0
      %651 = vmatprep.subr.mxu0 0.0
      %652 = vmatpush1.msra.mxu0 0.0
      %653 = vmatprep.subr.mxu0 0.0
      %654 = vmatpush1.msra.mxu0 0.0
      %655 = vmatprep.subr.mxu0 0.0
      %656 = vmatpush1.msra.mxu0 0.0
      %657 = vmatprep.subr.mxu0 0.0
      %658 = vmatpush1.msra.mxu0 0.0
      %659 = vmatprep.mubr.f32.mxu0 0.0
      %660 = vmatmul.mubr.f32.gmra.mrb[0].mxu0 %v513
      %v661 = vpop.f32.mrb[0].mxu0
      %v662 = vadd.f32 %v504, %v661
      %v663 = vpop.f32.mrb[0].mxu0
      %v664 = vadd.f32 %v504, %v663
      %665 = vmatprep.mubr.f32.mxu0 0.0
      %666 = vmatmul.mubr.f32.gmra.mrb[0].mxu0 %v516
      %v667 = vpop.f32.mrb[0].mxu0
      %v668 = vadd.f32 %v509, %v667
      %v669 = vpop.f32.mrb[0].mxu0
      %v670 = vadd.f32 %v509, %v669
      %671 = vdwg.mxu0
      %v672 = vtanh.pop %v585
      %v673 = vtanh.pop %v587
      %v674 = vtanh.pop %v662
      %v675 = vtanh.pop %v664
      %v676 = vtanh.pop %v591
      %v677 = vtanh.pop %v593
      %v678 = vtanh.pop %v668
      %v679 = vtanh.pop %v670
      %v680 = vld [vmem:[%s6] sm:$0xff]
      %v681 = vld [vmem:[%s6 + $0x8] sm:$0xff]
      %683 = vset.pattern.permute.xlu0 0
      %684 = vperm.xlu0 %683, %v680
      %v685 = vpop.permute.xlu0 %684
      %688 = vset.pattern.permute.xlu0 0
      %689 = vperm.xlu0 %688, %v681
      %v690 = vpop.permute.xlu0 %689
      %v692 = vmul.f32 %v685, %v672
      %v693 = vmul.f32 %v685, %v673
      %v694 = vmul.f32 %v685, %v674
      %v695 = vmul.f32 %v685, %v675
      %v696 = vmul.f32 %v690, %v676
      %v697 = vmul.f32 %v690, %v677
      %v698 = vmul.f32 %v690, %v678
      %v699 = vmul.f32 %v690, %v679
      %v700 = vadd.f32 %v692, %v696
      %v701 = vrot.slane %v700, 4
      %v702 = vadd.f32 %v700, %v701
      %v703 = vrot.slane %v702, 2
      %v704 = vadd.f32 %v702, %v703
      %v705 = vrot.slane %v704, 1
      %v706 = vadd.f32 %v704, %v705
      %v707 = vadd.f32 %v693, %v697
      %v708 = vrot.slane %v707, 4
      %v709 = vadd.f32 %v707, %v708
      %v710 = vrot.slane %v709, 2
      %v711 = vadd.f32 %v709, %v710
      %v712 = vrot.slane %v711, 1
      %v713 = vadd.f32 %v711, %v712
      %v714 = vadd.f32 %v694, %v698
      %v715 = vrot.slane %v714, 4
      %v716 = vadd.f32 %v714, %v715
      %v717 = vrot.slane %v716, 2
      %v718 = vadd.f32 %v716, %v717
      %v719 = vrot.slane %v718, 1
      %v720 = vadd.f32 %v718, %v719
      %v721 = vadd.f32 %v695, %v699
      %v722 = vrot.slane %v721, 4
      %v723 = vadd.f32 %v721, %v722
      %v724 = vrot.slane %v723, 2
      %v725 = vadd.f32 %v723, %v724
      %v726 = vrot.slane %v725, 1
      %v727 = vadd.f32 %v725, %v726
      %v728 = vld [vmem:[%s286] sm:$0xf]
      %v733 = vcombine.low %v706, %v713
      %v734 = vcombine.low %v720, %v727
      %v736 = vunpack.c.l.s4 1966171168
      %v737 = vunpack.c.0.s8 %v736
      %v738 = vlaneseq
      %v739 = vshrl.u32 %v738, 7
      %v740 = vsub.s32 %v737, %v739
      %v741 = vrot.slane %v733, %v740
      %v743 = vunpack.c.l.s4 1966171168
      %v744 = vunpack.c.0.s8 %v743
      %v745 = vlaneseq
      %v746 = vshrl.u32 %v745, 7
      %v747 = vsub.s32 %v744, %v746
      %v748 = vrot.slane %v734, %v747
      %v749 = vcombine.low %v741, %v748
      %v751 = vunpack.c.l.s4 1966171168
      %v752 = vunpack.c.0.s8 %v751
      %v753 = vlaneseq
      %v754 = vshrl.u32 %v753, 7
      %v755 = vsub.s32 %v752, %v754
      %v756 = vrot.slane %v749, %v755
      %v758 = vadd.f32 %v728, %v756
      %v759 = vlaneseq
      %vm760 = vcmp.ge.s32.totalorder %v759, 0
      %vm761 = vcmp.lt.s32.totalorder %v759, 512
      %vm762 = vmand %vm760, %vm761
      %763 = vst.msk [vmem:[%s297] sm:$0xf] %vm762, %v758
      %s764 = smul.u32 4, %s18
      %p765 = scmp.lt.s32.totalorder %s764, 7
      %s766 = scalar_select %p765, %s764, 7
      %s767 = scalar_lea.vmem %s7, %s766
      // Predicated region
      $region49: #{model_forward.1} parent=47 // pred_check
        %p768 = pneg %p193
      $region50: #{model_forward.1} parent=47 // pred_check_branch
        %770 = sbr.rel (%p768) target = $region52
      $region51: #{model_forward.1} parent=47 // pred_region
        %s771 = smul.u32 4, %s18
      $region52: #{model_forward.1} parent=47 // pred_fallthru
        _
    $region48: #{model_forward.1} parent=5 // pred_fallthru
      _
    %p772 = scmp.le.s32.totalorder 2, %s13
    // Predicated region
    $region53: #{model_forward.1} parent=5 // pred_check
      %p773 = pneg %p772
    $region54: #{model_forward.1} parent=5 // pred_check_branch
      %775 = sbr.rel (%p773) target = $region56
    $region55: #{model_forward.1} parent=5 // pred_region
      %s776 = ssub.s32 %s13, 2
      // Predicated region
      $region57: #{model_forward.1} parent=55 // pred_check
        %p777 = pneg %p199
      $region58: #{model_forward.1} parent=55 // pred_check_branch
        %779 = sbr.rel (%p777) target = $region60
      $region59: #{model_forward.1} parent=55 // pred_region
        %s780 = smul.u32 4, %s19
        %p781 = scmp.lt.s32.totalorder %s780, 7
        %s782 = scalar_select %p781, %s780, 7
        %s783 = scalar_lea.vmem %s7, %s782
      $region60: #{model_forward.1} parent=55 // pred_fallthru
        _
    $region56: #{model_forward.1} parent=5 // pred_fallthru
      _
  $region6: #{model_forward.1} parent=0 // loop_footer
    %s17 = sadd.s32 1, %s13
  $region7: #{model_forward.1} parent=0 // loop_footer_branch
    %12 = sbr.rel target = $region3
  $region8: #{model_forward.1} parent=0 // loop_exit
    _

</llo_original>
